<compile_context>
chip_gen: v6e
topology: v6e:2x2x1
jax: 0.10.0
libtpu: 0.0.40
codegen_flags: <defaults>
</compile_context>

<pallas_src>
import math

import numpy as np
import jax
import jax.numpy as jnp
from jax.experimental import pallas as pl
from jax.experimental.pallas import tpu as pltpu


# ----------------------------------------------------------------------------
# Bilinear x2 (align_corners=False) tap tables — shared by kernel coefficients
# and the pure-JAX reference.
# ----------------------------------------------------------------------------
def _bilinear_taps(in_size: int):
    """Per-output-index (i0, i1, w0, w1) for x2 bilinear, align_corners=False."""
    taps = []
    for o in range(2 * in_size):
        src = max((o + 0.5) * 0.5 - 0.5, 0.0)
        i0 = min(int(math.floor(src)), in_size - 1)
        i1 = min(i0 + 1, in_size - 1)
        lam = src - float(i0)
        taps.append((i0, i1, 1.0 - lam, lam))
    return taps


def _bilinear_matrix_np(in_size: int) -> np.ndarray:
    """(2*in_size, in_size) dense operator for the same upsample (reference only)."""
    u = np.zeros((2 * in_size, in_size), np.float32)
    for o, (i0, i1, w0, w1) in enumerate(_bilinear_taps(in_size)):
        u[o, i0] += w0
        u[o, i1] += w1
    return u


def _axis_tap_coefs(n: int):
    """Split each output index's taps into weights on source index base-1/base/base+1,
    where base = out_index // 2 (exactly the support of x2 bilinear, a.c.=False)."""
    a_self = np.zeros(2 * n, np.float32)
    a_prev = np.zeros(2 * n, np.float32)
    a_next = np.zeros(2 * n, np.float32)
    for o, (i0, i1, w0, w1) in enumerate(_bilinear_taps(n)):
        base = o // 2
        for idx, wt in ((i0, w0), (i1, w1)):
            if idx == base - 1:
                a_prev[o] += wt
            elif idx == base + 1:
                a_next[o] += wt
            else:
                assert idx == base
                a_self[o] += wt
    return a_self, a_prev, a_next


def _lane_coefs(H: int, W: int) -> np.ndarray:
    """(6, H2*W2) per-lane blend coefficients for the flat NCHW-row-major layout:
    rows = [h_self, h_up, h_down, w_self, w_left, w_right].  Boundary lanes get 0
    on the missing neighbour (so roll wrap-around contributes nothing)."""
    H2, W2 = 2 * H, 2 * W
    hs, hu, hd = _axis_tap_coefs(H)
    ws, wl, wr = _axis_tap_coefs(W)
    j = np.arange(H2 * W2)
    r2 = j // W2          # output row  (2h + dh)
    c2 = j % W2           # output col  (2w + dw)
    return np.stack([hs[r2], hu[r2], hd[r2], ws[c2], wl[c2], wr[c2]]).astype(np.float32)


# ----------------------------------------------------------------------------
# Kernel
# ----------------------------------------------------------------------------
def _make_kernel(H: int, W: int):
    W2 = 2 * W
    L2 = 4 * H * W          # flattened H2*W2 lane dimension
    S_H = 2 * W2            # lane distance between vertically adjacent source rows

    def kernel(x_ref, w_ref, b_ref, coef_ref, o_ref):
        # 1x1 conv (BN scale pre-folded), bias, LeakyReLU(0.1).
        # bf16 operands, f32 accumulation on the MXU.  x was NN-x2-expanded on
        # the host, so e[c, j] is the activation at source pixel (h, w) of lane j.
        e = jnp.dot(w_ref[...], x_ref[0], preferred_element_type=jnp.float32)   # (Ct, L2)
        e = e + b_ref[...]
        e = jnp.where(e >= 0, e, 0.1 * e)

        cf = coef_ref[...]                                  # (6, L2) f32, broadcast over channels
        h_self, h_up, h_dn = cf[0:1], cf[1:2], cf[2:3]
        w_self, w_lf, w_rt = cf[3:4], cf[4:5], cf[5:6]

        # Bilinear x2, H direction: 2-tap blend with the source row above/below.
        up = pltpu.roll(e, S_H, axis=1)                     # e[j - S_H]  -> y[h-1, w]
        dn = pltpu.roll(e, L2 - S_H, axis=1)                # e[j + S_H]  -> y[h+1, w]
        eh = h_self * e + h_up * up + h_dn * dn             # boundary coefs are 0 -> wrap harmless

        # Bilinear x2, W direction: 2-tap blend with the source column left/right.
        lf = pltpu.roll(eh, 2, axis=1)                      # eh[j - 2]   -> col w-1
        rt = pltpu.roll(eh, L2 - 2, axis=1)                 # eh[j + 2]   -> col w+1
        out = w_self * eh + w_lf * lf + w_rt * rt

        o_ref[0] = out.astype(o_ref.dtype)                  # single lane-dense store

    return kernel


# ----------------------------------------------------------------------------
# Host wrapper
# ----------------------------------------------------------------------------
def router_v3_forward(x1, x2, conv_w, bn_gamma, bn_beta, bn_mean, bn_var,
                      eps=1e-5, out_dtype=jnp.float32, c_tile=None):
    if conv_w.ndim == 4:                        # (oup, inp, 1, 1) -> (oup, inp)
        conv_w = conv_w[:, :, 0, 0]
    B, C_in, H, W = x1.shape
    C_out = conv_w.shape[0]
    H2, W2 = 2 * H, 2 * W
    L2 = H2 * W2
    Bx, C_skip, Hx, Wx = x2.shape
    assert Bx == B

    # Module's F.pad convention: diffX is measured on the H axis but applied to
    # W padding, diffY measured on W but applied to H padding (kept verbatim).
    diffX = H2 - Hx
    diffY = W2 - Wx
    pad_w = (diffX // 2, int(diffX / 2))
    pad_h = (diffY // 2, int(diffY / 2))
    # TODO(synk): negative pad amounts (cropping when x2 is larger than 2x) are not handled.
    assert min(pad_w + pad_h) >= 0
    assert pad_h[0] + pad_h[1] + Hx == H2 and pad_w[0] + pad_w[1] + Wx == W2

    # Fold eval-mode BatchNorm into the conv weight / per-channel bias.
    scale = bn_gamma / jnp.sqrt(bn_var + eps)
    w_fold = (conv_w * scale[:, None]).astype(jnp.bfloat16)                 # (C_out, C_in)
    bias = (bn_beta - bn_mean * scale).reshape(C_out, 1).astype(jnp.float32)

    # Host-side nearest-neighbour x2 expansion of x1 (pointwise conv/BN/LeakyReLU
    # commute with it) -> every in-kernel tensor is flat and lane-dense.
    x1_b = x1.astype(jnp.bfloat16)
    x1e = jnp.broadcast_to(x1_b[:, :, :, None, :, None],
                           (B, C_in, H, 2, W, 2)).reshape(B, C_in, L2)

    coef = jnp.asarray(_lane_coefs(H, W))                                   # (6, L2) f32

    # Channel tiling: bounds VMEM for large C_out and gives the parallel grid an
    # extent >= 2 even when B == 1 (v7x has two TensorCores).
    if c_tile is None:
        if C_out <= 128:
            c_tile = C_out
        else:
            divs = [d for d in range(8, 129, 8) if C_out % d == 0]
            c_tile = max(divs) if divs else C_out
    assert C_out % c_tile == 0
    n_ct = C_out // c_tile

    x1_up_flat = pl.pallas_call(
        _make_kernel(H, W),
        out_shape=jax.ShapeDtypeStruct((B, C_out, L2), out_dtype),
        grid=(B, n_ct),
        in_specs=[
            pl.BlockSpec((1, C_in, L2), lambda b, c: (b, 0, 0)),
            pl.BlockSpec((c_tile, C_in), lambda b, c: (c, 0)),
            pl.BlockSpec((c_tile, 1), lambda b, c: (c, 0)),
            pl.BlockSpec((6, L2), lambda b, c: (0, 0)),
        ],
        out_specs=pl.BlockSpec((1, c_tile, L2), lambda b, c: (b, c, 0)),
        compiler_params=pltpu.CompilerParams(
            dimension_semantics=("parallel", "parallel"),
            vmem_limit_bytes=48 * 1024 * 1024,
        ),
    )(x1e, w_fold, bias, coef)

    # Free row-major reshape back to NCHW.
    x1_up = x1_up_flat.reshape(B, C_out, H2, W2)

    # F.pad + channel concat of the skip path: plain XLA copies (DMA engines),
    # kept entirely off the kernel's vector-register path.
    x2p = jnp.pad(x2, ((0, 0), (0, 0), pad_h, pad_w)).astype(out_dtype)
    return jnp.concatenate([x1_up, x2p], axis=1)


# ----------------------------------------------------------------------------
# Pure-JAX f32 reference (independent dense-operator formulation)
# ----------------------------------------------------------------------------
def reference_forward(x1, x2, conv_w, bn_gamma, bn_beta, bn_mean, bn_var, eps=1e-5):
    scale = bn_gamma / jnp.sqrt(bn_var + eps)
    bias = bn_beta - bn_mean * scale
    y = jnp.einsum("oc,bchw->bohw", conv_w, x1)
    y = y * scale[None, :, None, None] + bias[None, :, None, None]
    y = jnp.where(y >= 0, y, 0.1 * y)
    uh = jnp.asarray(_bilinear_matrix_np(x1.shape[2]))
    uw = jnp.asarray(_bilinear_matrix_np(x1.shape[3]))
    up = jnp.einsum("ih,bchw->bciw", uh, y)
    up = jnp.einsum("jw,bciw->bcij", uw, up)
    diffX = up.shape[2] - x2.shape[2]
    diffY = up.shape[3] - x2.shape[3]
    x2p = jnp.pad(
        x2,
        ((0, 0), (0, 0),
         (diffY // 2, int(diffY / 2)),
         (diffX // 2, int(diffX / 2))),
    )
    return jnp.concatenate([up, x2p], axis=1)


if __name__ == "__main__":
    B, C_in, C_out, H, W = 2, 4, 8, 16, 16
    C_skip = 6

    key = jax.random.PRNGKey(0)
    ks = jax.random.split(key, 7)
    x1 = jax.random.normal(ks[0], (B, C_in, H, W), jnp.float32)
    # x2 slightly smaller so the F.pad branch is exercised (diff = 2 -> pad 1/1).
    x2 = jax.random.normal(ks[1], (B, C_skip, 2 * H - 2, 2 * W - 2), jnp.float32)

    # Deterministic synthetic parameters (Conv2d(inp, oup, 1, bias=False) + BN(oup)).
    conv_w = 0.1 * jax.random.normal(ks[2], (C_out, C_in), jnp.float32)
    bn_gamma = 1.0 + 0.1 * jax.random.normal(ks[3], (C_out,), jnp.float32)
    bn_beta = 0.1 * jax.random.normal(ks[4], (C_out,), jnp.float32)
    bn_mean = 0.1 * jax.random.normal(ks[5], (C_out,), jnp.float32)
    bn_var = 0.5 + jnp.abs(jax.random.normal(ks[6], (C_out,), jnp.float32))

    fwd = jax.jit(router_v3_forward)
    out = jax.block_until_ready(fwd(x1, x2, conv_w, bn_gamma, bn_beta, bn_mean, bn_var))

    ref = reference_forward(x1, x2, conv_w, bn_gamma, bn_beta, bn_mean, bn_var)
    assert out.shape == (B, C_out + C_skip, 2 * H, 2 * W), out.shape
    # bf16 matmul operands with f32 accumulation -> inference-level tolerance.
    max_err = float(jnp.max(jnp.abs(out - ref)))
    assert jnp.allclose(out, ref, rtol=2e-2, atol=2e-2), max_err

    print("KERNEL_OK")
</pallas_src>

<mosaic_0001>
module attributes {stable_mosaic.version = 11 : i64} {
  func.func @kernel(%arg0: i32, %arg1: i32, %arg2: memref<1x4x1024xbf16, #tpu.memory_space<vmem>>, %arg3: memref<8x4xbf16, #tpu.memory_space<vmem>>, %arg4: memref<8x1xf32, #tpu.memory_space<vmem>>, %arg5: memref<6x1024xf32, #tpu.memory_space<vmem>>, %arg6: memref<1x8x1024xf32, #tpu.memory_space<vmem>>) attributes {dimension_semantics = [#tpu.dimension_semantics<parallel>, #tpu.dimension_semantics<parallel>], iteration_bounds = array<i64: 2, 1>, scalar_prefetch = 0 : i64, scratch_operands = 0 : i64, tpu.core_type = #tpu.core_type<tc>, window_params = [{transform_indices = @transform_0, window_bounds = array<i64: 1, 4, 1024>}, {transform_indices = @transform_1, window_bounds = array<i64: 8, 4>}, {transform_indices = @transform_2, window_bounds = array<i64: 8, 1>}, {pipeline_mode = #tpu.pipeline_mode<synchronous>, transform_indices = @transform_3, window_bounds = array<i64: 6, 1024>}, {transform_indices = @transform_4, window_bounds = array<i64: 1, 8, 1024>}]} {
    %c0 = arith.constant 0 : index
    %c0_0 = arith.constant 0 : index
    %0 = vector.load %arg3[%c0, %c0_0] : memref<8x4xbf16, #tpu.memory_space<vmem>>, vector<8x4xbf16>
    %c0_1 = arith.constant 0 : index
    %c0_2 = arith.constant 0 : index
    %c0_3 = arith.constant 0 : index
    %1 = vector.load %arg2[%c0_1, %c0_2, %c0_3] : memref<1x4x1024xbf16, #tpu.memory_space<vmem>>, vector<1x4x1024xbf16>
    %2 = vector.shape_cast %1 : vector<1x4x1024xbf16> to vector<4x1024xbf16>
    %cst = arith.constant dense<0.000000e+00> : vector<8x1024xf32>
    %3 = tpu.matmul %0, %2, %cst {dimension_numbers = #tpu.dot_dimension_numbers<[1], [0], [0], [1], [0, 0, 1, 1], [], []>} : vector<8x4xbf16>, vector<4x1024xbf16>, vector<8x1024xf32> -> vector<8x1024xf32>
    %c0_4 = arith.constant 0 : index
    %c0_5 = arith.constant 0 : index
    %4 = vector.load %arg4[%c0_4, %c0_5] : memref<8x1xf32, #tpu.memory_space<vmem>>, vector<8x1xf32>
    %5 = vector.broadcast %4 : vector<8x1xf32> to vector<8x1024xf32>
    %6 = arith.addf %3, %5 : vector<8x1024xf32>
    %cst_6 = arith.constant 0.000000e+00 : f32
    %7 = vector.broadcast %cst_6 : f32 to vector<8x1024xf32>
    %8 = arith.cmpf oge, %6, %7 : vector<8x1024xf32>
    %cst_7 = arith.constant 1.000000e-01 : f32
    %9 = vector.broadcast %cst_7 : f32 to vector<8x1024xf32>
    %10 = arith.mulf %9, %6 : vector<8x1024xf32>
    %11 = arith.select %8, %6, %10 : vector<8x1024xi1>, vector<8x1024xf32>
    %c0_8 = arith.constant 0 : index
    %c0_9 = arith.constant 0 : index
    %12 = vector.load %arg5[%c0_8, %c0_9] : memref<6x1024xf32, #tpu.memory_space<vmem>>, vector<6x1024xf32>
    %13 = vector.extract_strided_slice %12 {offsets = [0, 0], sizes = [1, 1024], strides = [1, 1]} : vector<6x1024xf32> to vector<1x1024xf32>
    %14 = vector.extract_strided_slice %12 {offsets = [1, 0], sizes = [1, 1024], strides = [1, 1]} : vector<6x1024xf32> to vector<1x1024xf32>
    %15 = vector.extract_strided_slice %12 {offsets = [2, 0], sizes = [1, 1024], strides = [1, 1]} : vector<6x1024xf32> to vector<1x1024xf32>
    %16 = vector.extract_strided_slice %12 {offsets = [3, 0], sizes = [1, 1024], strides = [1, 1]} : vector<6x1024xf32> to vector<1x1024xf32>
    %17 = vector.extract_strided_slice %12 {offsets = [4, 0], sizes = [1, 1024], strides = [1, 1]} : vector<6x1024xf32> to vector<1x1024xf32>
    %18 = vector.extract_strided_slice %12 {offsets = [5, 0], sizes = [1, 1024], strides = [1, 1]} : vector<6x1024xf32> to vector<1x1024xf32>
    %c64_i32 = arith.constant 64 : i32
    %19 = tpu.dynamic_rotate %11 by %c64_i32 dim 1 : vector<8x1024xf32>, i32 -> vector<8x1024xf32>
    %c960_i32 = arith.constant 960 : i32
    %20 = tpu.dynamic_rotate %11 by %c960_i32 dim 1 : vector<8x1024xf32>, i32 -> vector<8x1024xf32>
    %21 = vector.broadcast %13 : vector<1x1024xf32> to vector<8x1024xf32>
    %22 = arith.mulf %21, %11 : vector<8x1024xf32>
    %23 = vector.broadcast %14 : vector<1x1024xf32> to vector<8x1024xf32>
    %24 = arith.mulf %23, %19 : vector<8x1024xf32>
    %25 = arith.addf %22, %24 : vector<8x1024xf32>
    %26 = vector.broadcast %15 : vector<1x1024xf32> to vector<8x1024xf32>
    %27 = arith.mulf %26, %20 : vector<8x1024xf32>
    %28 = arith.addf %25, %27 : vector<8x1024xf32>
    %c2_i32 = arith.constant 2 : i32
    %29 = tpu.dynamic_rotate %28 by %c2_i32 dim 1 : vector<8x1024xf32>, i32 -> vector<8x1024xf32>
    %c1022_i32 = arith.constant 1022 : i32
    %30 = tpu.dynamic_rotate %28 by %c1022_i32 dim 1 : vector<8x1024xf32>, i32 -> vector<8x1024xf32>
    %31 = vector.broadcast %16 : vector<1x1024xf32> to vector<8x1024xf32>
    %32 = arith.mulf %31, %28 : vector<8x1024xf32>
    %33 = vector.broadcast %17 : vector<1x1024xf32> to vector<8x1024xf32>
    %34 = arith.mulf %33, %29 : vector<8x1024xf32>
    %35 = arith.addf %32, %34 : vector<8x1024xf32>
    %36 = vector.broadcast %18 : vector<1x1024xf32> to vector<8x1024xf32>
    %37 = arith.mulf %36, %30 : vector<8x1024xf32>
    %38 = arith.addf %35, %37 : vector<8x1024xf32>
    %c0_10 = arith.constant 0 : index
    %c0_11 = arith.constant 0 : index
    %c0_12 = arith.constant 0 : index
    %39 = vector.load %arg6[%c0_10, %c0_11, %c0_12] : memref<1x8x1024xf32, #tpu.memory_space<vmem>>, vector<1x8x1024xf32>
    %40 = vector.shape_cast %39 : vector<1x8x1024xf32> to vector<8x1024xf32>
    %41 = vector.shape_cast %38 : vector<8x1024xf32> to vector<1x8x1024xf32>
    tpu.vector_store %arg6[%c0_10, %c0_11, %c0_12], %41 {strides = array<i32>} : memref<1x8x1024xf32, #tpu.memory_space<vmem>>, vector<1x8x1024xf32>,
    return
  }
  func.func @transform_0(%arg0: i32, %arg1: i32) -> (i32, i32, i32) {
    %c0_i32 = arith.constant 0 : i32
    %c0_i32_0 = arith.constant 0 : i32
    %c0_i32_1 = arith.constant 0 : i32
    return %arg0, %c0_i32, %c0_i32_0 : i32, i32, i32
  }
  func.func @transform_1(%arg0: i32, %arg1: i32) -> (i32, i32) {
    %c0_i32 = arith.constant 0 : i32
    %c0_i32_0 = arith.constant 0 : i32
    return %arg1, %c0_i32 : i32, i32
  }
  func.func @transform_2(%arg0: i32, %arg1: i32) -> (i32, i32) {
    %c0_i32 = arith.constant 0 : i32
    %c0_i32_0 = arith.constant 0 : i32
    return %arg1, %c0_i32 : i32, i32
  }
  func.func @transform_3(%arg0: i32, %arg1: i32) -> (i32, i32) {
    %c0_i32 = arith.constant 0 : i32
    %c0_i32_0 = arith.constant 0 : i32
    %c0_i32_1 = arith.constant 0 : i32
    return %c0_i32, %c0_i32_0 : i32, i32
  }
  func.func @transform_4(%arg0: i32, %arg1: i32) -> (i32, i32, i32) {
    %c0_i32 = arith.constant 0 : i32
    %c0_i32_0 = arith.constant 0 : i32
    return %arg0, %arg1, %c0_i32 : i32, i32, i32
  }
}

</mosaic_0001>

<llo_original>
// kernel: router_v3_forward.1
$region0: #{router_v3_forward.1}
  #allocation0 [shape = 'u32[]', space=smem, size = 0x4, offset = 0x4, fixed_abs, tag = 'smem constant byte address 0x4 - core index']
  #allocation1 [shape = 'u32[144,128]{1,0:T(1,128)}', space=vmem, size = 0x12000, scoped, tag = 'internal scratch']
  %s0 = inlined_call_operand.vmem [shape: bf16[2,4,1024], index: 0, kind: input, shape index: {}]
  %s1 = inlined_call_operand.vmem [shape: bf16[8,4], index: 1, kind: input, shape index: {}]
  %s2 = inlined_call_operand.vmem [shape: f32[8,1], index: 2, kind: input, shape index: {}]
  %s3 = inlined_call_operand.vmem [shape: f32[6,1024], index: 3, kind: input, shape index: {}]
  %s4 = inlined_call_operand.vmem [shape: f32[2,8,1024], index: 4, kind: output, shape index: {}]
  %s5 = sld [smem:[#allocation0]]
  $region49: #{router_v3_forward.1} parent=0
    _
  %s7 = ssub.s32 1, %s5
  %s8 = scalar_select 0, %s7, %s5
  loop: start=0, step=1, limit=4
  $region2: #{router_v3_forward.1} parent=0 // loop_pre_header
    _
  $region3: #{router_v3_forward.1} parent=0 // loop_header
    %s10 = sphi 0, %s14
    %p11 = scmp.ge.s32.totalorder %s10, 4
    %s17 = sphi 0, %s29
    %s18 = sphi 0, %s25
    %s19 = sphi 0, %s17
    %s20 = sphi 0, %s18
    %s21 = sphi 0, %s19
    %s22 = sphi 0, %s20
    %s32 = sphi 0, %s34
    %s35 = sphi 0, %s32
    %s36 = sphi 0, %s35
    %s52 = sphi 0, %s36
    %s58 = sphi 0, %s60
    %s61 = sphi 0, %s58
    %s62 = sphi 0, %s61
    %s78 = sphi 0, %s62
    %s84 = sphi 0, %s86
    %s87 = sphi 0, %s84
    %s88 = sphi 0, %s87
    %s104 = sphi 0, %s88
    %s108 = sphi 0, %s108
    %s110 = sphi 0, %s108
    %s111 = sphi 0, %s110
    %s125 = sphi 0, %s111
    %s133 = sphi 0, %s135
    %s136 = sphi 0, %s133
    %s137 = sphi 0, %s136
    %s153 = sphi 0, %s137
  $region4: #{router_v3_forward.1} parent=0 // loop_header_branch
    %13 = sbr.rel (%p11) target = $region8
  $region5: #{router_v3_forward.1} parent=0 // loop_body
    %s15 = ssub.s32 %s10, 1
    %s16 = ssub.s32 %s10, 2
    %s23 = sadd.s32 1, %s18
    %p24 = scmp.ge.s32.totalorder %s23, 1
    %s25 = scalar_select %p24, 0, %s23
    %s26 = sadd.s32 1, %s17
    %s27 = scalar_select %p24, %s26, %s17
    %p28 = scmp.ge.s32.totalorder %s27, 2
    %s29 = scalar_select %p28, 0, %s27
    %s30 = ssub.s32 %s17, %s29
    %p31 = scmp.eq.s32.totalorder %s30, 0
    %s33 = sadd.s32 %s32, 1
    %s34 = scalar_select %p31, %s32, %s33
    %p37 = pneg %p31
    %p38 = scmp.eq.s32.totalorder %s10, 1
    %p39 = por %p37, %p38
    %p40 = scmp.ne.s32.totalorder %s32, %s35
    %p41 = scmp.eq.s32.totalorder %s10, 0
    %p42 = por %p40, %p41
    %p43 = scmp.ne.s32.totalorder %s32, %s35
    %p44 = scmp.eq.s32.totalorder %s15, 1
    %p45 = por %p43, %p44
    %p46 = scmp.ne.s32.totalorder %s35, %s36
    %p47 = scmp.eq.s32.totalorder %s15, 0
    %p48 = por %p46, %p47
    %p49 = scmp.ne.s32.totalorder %s35, %s36
    %p50 = scmp.eq.s32.totalorder %s16, 1
    %p51 = por %p49, %p50
    %p53 = scmp.ne.s32.totalorder %s36, %s52
    %p54 = scmp.eq.s32.totalorder %s16, 0
    %p55 = por %p53, %p54
    %s56 = ssub.s32 %s18, %s25
    %p57 = scmp.eq.s32.totalorder %s56, 0
    %s59 = sadd.s32 %s58, 1
    %s60 = scalar_select %p57, %s58, %s59
    %p63 = pneg %p57
    %p64 = scmp.eq.s32.totalorder %s10, 1
    %p65 = por %p63, %p64
    %p66 = scmp.ne.s32.totalorder %s58, %s61
    %p67 = scmp.eq.s32.totalorder %s10, 0
    %p68 = por %p66, %p67
    %p69 = scmp.ne.s32.totalorder %s58, %s61
    %p70 = scmp.eq.s32.totalorder %s15, 1
    %p71 = por %p69, %p70
    %p72 = scmp.ne.s32.totalorder %s61, %s62
    %p73 = scmp.eq.s32.totalorder %s15, 0
    %p74 = por %p72, %p73
    %p75 = scmp.ne.s32.totalorder %s61, %s62
    %p76 = scmp.eq.s32.totalorder %s16, 1
    %p77 = por %p75, %p76
    %p79 = scmp.ne.s32.totalorder %s62, %s78
    %p80 = scmp.eq.s32.totalorder %s16, 0
    %p81 = por %p79, %p80
    %s82 = ssub.s32 %s18, %s25
    %p83 = scmp.eq.s32.totalorder %s82, 0
    %s85 = sadd.s32 %s84, 1
    %s86 = scalar_select %p83, %s84, %s85
    %p89 = pneg %p83
    %p90 = scmp.eq.s32.totalorder %s10, 1
    %p91 = por %p89, %p90
    %p92 = scmp.ne.s32.totalorder %s84, %s87
    %p93 = scmp.eq.s32.totalorder %s10, 0
    %p94 = por %p92, %p93
    %p95 = scmp.ne.s32.totalorder %s84, %s87
    %p96 = scmp.eq.s32.totalorder %s15, 1
    %p97 = por %p95, %p96
    %p98 = scmp.ne.s32.totalorder %s87, %s88
    %p99 = scmp.eq.s32.totalorder %s15, 0
    %p100 = por %p98, %p99
    %p101 = scmp.ne.s32.totalorder %s87, %s88
    %p102 = scmp.eq.s32.totalorder %s16, 1
    %p103 = por %p101, %p102
    %p105 = scmp.ne.s32.totalorder %s88, %s104
    %p106 = scmp.eq.s32.totalorder %s16, 0
    %p107 = por %p105, %p106
    %s109 = sadd.s32 %s108, 1
    %p112 = scmp.eq.s32.totalorder %s10, 1
    %p113 = scmp.ne.s32.totalorder %s108, %s110
    %p114 = scmp.eq.s32.totalorder %s10, 0
    %p115 = por %p113, %p114
    %p116 = scmp.ne.s32.totalorder %s108, %s110
    %p117 = scmp.eq.s32.totalorder %s15, 1
    %p118 = por %p116, %p117
    %p119 = scmp.ne.s32.totalorder %s110, %s111
    %p120 = scmp.eq.s32.totalorder %s15, 0
    %p121 = por %p119, %p120
    %p122 = scmp.ne.s32.totalorder %s110, %s111
    %p123 = scmp.eq.s32.totalorder %s16, 1
    %p124 = por %p122, %p123
    %p126 = scmp.ne.s32.totalorder %s111, %s125
    %p127 = scmp.eq.s32.totalorder %s16, 0
    %p128 = por %p126, %p127
    %s129 = ssub.s32 %s17, %s29
    %s130 = ssub.s32 %s18, %s25
    %s131 = sor.u32 %s129, %s130
    %p132 = scmp.eq.s32.totalorder %s131, 0
    %s134 = sadd.s32 %s133, 1
    %s135 = scalar_select %p132, %s133, %s134
    %p138 = pneg %p132
    %p139 = scmp.eq.s32.totalorder %s10, 1
    %p140 = por %p138, %p139
    %p141 = scmp.ne.s32.totalorder %s133, %s136
    %p142 = scmp.eq.s32.totalorder %s10, 0
    %p143 = por %p141, %p142
    %p144 = scmp.ne.s32.totalorder %s133, %s136
    %p145 = scmp.eq.s32.totalorder %s15, 1
    %p146 = por %p144, %p145
    %p147 = scmp.ne.s32.totalorder %s136, %s137
    %p148 = scmp.eq.s32.totalorder %s15, 0
    %p149 = por %p147, %p148
    %p150 = scmp.ne.s32.totalorder %s136, %s137
    %p151 = scmp.eq.s32.totalorder %s16, 1
    %p152 = por %p150, %p151
    %p154 = scmp.ne.s32.totalorder %s137, %s153
    %p155 = scmp.eq.s32.totalorder %s16, 0
    %p156 = por %p154, %p155
    %p157 = scmp.le.s32.totalorder 1, %s10
    %p158 = scmp.lt.s32.totalorder %s10, 3
    %p159 = pnand %p157, %p158
    %p160 = pneg %p159
    // Predicated region
    $region9: #{router_v3_forward.1} parent=5 // pred_check
      _
    $region10: #{router_v3_forward.1} parent=5 // pred_check_branch
      %162 = sbr.rel (%p159) target = $region12
    $region11: #{router_v3_forward.1} parent=5 // pred_region
      %s163 = ssub.s32 %s10, 1
      // Predicated region
      $region13: #{router_v3_forward.1} parent=11 // pred_check
        %p164 = pneg %p74
      $region14: #{router_v3_forward.1} parent=11 // pred_check_branch
        %166 = sbr.rel (%p164) target = $region16
      $region15: #{router_v3_forward.1} parent=11 // pred_region
        %p167 = scmp.lt.s32.totalorder %s20, 0
        %s168 = scalar_select %p167, %s20, 0
        %s169 = smul.addr %s168, 4
        %s170 = scalar_lea.vmem %s1, %s169
      $region16: #{router_v3_forward.1} parent=11 // pred_fallthru
        _
      // Predicated region
      $region17: #{router_v3_forward.1} parent=11 // pred_check
        %p171 = pneg %p100
      $region18: #{router_v3_forward.1} parent=11 // pred_check_branch
        %173 = sbr.rel (%p171) target = $region20
      $region19: #{router_v3_forward.1} parent=11 // pred_region
        %p174 = scmp.lt.s32.totalorder %s20, 0
        %s175 = scalar_select %p174, %s20, 0
        %s176 = smul.addr %s175, 8
        %s177 = scalar_lea.vmem %s2, %s176
      $region20: #{router_v3_forward.1} parent=11 // pred_fallthru
        _
      // Predicated region
      $region21: #{router_v3_forward.1} parent=11 // pred_check
        %p178 = pneg %p121
      $region22: #{router_v3_forward.1} parent=11 // pred_check_branch
        %180 = sbr.rel (%p178) target = $region24
      $region23: #{router_v3_forward.1} parent=11 // pred_region
        _
      $region24: #{router_v3_forward.1} parent=11 // pred_fallthru
        _
    $region12: #{router_v3_forward.1} parent=5 // pred_fallthru
      _
    %p181 = scmp.lt.s32.totalorder %s10, 2
    // Predicated region
    $region25: #{router_v3_forward.1} parent=5 // pred_check
      %p182 = pneg %p181
    $region26: #{router_v3_forward.1} parent=5 // pred_check_branch
      %184 = sbr.rel (%p182) target = $region28
    $region27: #{router_v3_forward.1} parent=5 // pred_region
      // Predicated region
      $region29: #{router_v3_forward.1} parent=27 // pred_check
        %p185 = pneg %p42
      $region30: #{router_v3_forward.1} parent=27 // pred_check_branch
        %187 = sbr.rel (%p185) target = $region32
      $region31: #{router_v3_forward.1} parent=27 // pred_region
        %p188 = scmp.lt.s32.totalorder %s17, 1
        %s189 = scalar_select %p188, %s17, 1
        %s190 = smul.addr %s189, 8
        %s191 = smul.addr %s190, 2
        %s192 = scalar_lea.vmem %s0, %s191
      $region32: #{router_v3_forward.1} parent=27 // pred_fallthru
        _
    $region28: #{router_v3_forward.1} parent=5 // pred_fallthru
      _
    %p193 = scmp.le.s32.totalorder 1, %s10
    %p194 = scmp.lt.s32.totalorder %s10, 3
    %p195 = pnand %p193, %p194
    %p196 = pneg %p195
    // Predicated region
    $region33: #{router_v3_forward.1} parent=5 // pred_check
      _
    $region34: #{router_v3_forward.1} parent=5 // pred_check_branch
      %198 = sbr.rel (%p195) target = $region36
    $region35: #{router_v3_forward.1} parent=5 // pred_region
      %s199 = ssub.s32 %s10, 1
      %p200 = scmp.lt.s32.totalorder %s19, 1
      %s201 = scalar_select %p200, %s19, 1
      %s202 = smul.addr %s201, 8
      %s203 = smul.addr %s202, 2
      %s204 = scalar_lea.vmem %s0, %s203
      %p205 = pneg %p48
      %p206 = pneg %p45
      %p207 = scmp.lt.s32.totalorder %s20, 0
      %s208 = scalar_select %p207, %s20, 0
      %s209 = smul.addr %s208, 4
      %s210 = scalar_lea.vmem %s1, %s209
      %p211 = pneg %p74
      %p212 = pneg %p71
      %p213 = scmp.lt.s32.totalorder %s20, 0
      %s214 = scalar_select %p213, %s20, 0
      %s215 = smul.addr %s214, 8
      %s216 = scalar_lea.vmem %s2, %s215
      %p217 = pneg %p100
      %p218 = pneg %p97
      %p219 = pneg %p121
      %p220 = pneg %p118
      %p221 = pneg %p149
      %p222 = pneg %p146
      %p223 = scmp.lt.s32.totalorder %s19, 1
      %s224 = scalar_select %p223, %s19, 1
      %p225 = scmp.lt.s32.totalorder %s20, 0
      %s226 = scalar_select %p225, %s20, 0
      %s227 = smul.addr %s226, 8
      %s228 = smul.addr %s224, 8
      %s229 = sadd.s32 %s227, %s228
      %s230 = smul.addr %s229, 8
      %s231 = scalar_lea.vmem %s4, %s230
      %p232 = scmp.lt.s32.totalorder %s19, 1
      %s233 = scalar_select %p232, %s19, 1
      %s234 = smul.addr %s233, 8
      %s235 = smul.addr %s234, 2
      %s236 = scalar_lea.vmem %s0, %s235
      %p237 = scmp.lt.s32.totalorder %s20, 0
      %s238 = scalar_select %p237, %s20, 0
      %s239 = smul.addr %s238, 4
      %s240 = scalar_lea.vmem %s1, %s239
      %p241 = scmp.lt.s32.totalorder %s20, 0
      %s242 = scalar_select %p241, %s20, 0
      %s243 = smul.addr %s242, 8
      %s244 = scalar_lea.vmem %s2, %s243
      %p245 = scmp.lt.s32.totalorder %s19, 1
      %s246 = scalar_select %p245, %s19, 1
      %p247 = scmp.lt.s32.totalorder %s20, 0
      %s248 = scalar_select %p247, %s20, 0
      %s249 = smul.addr %s248, 8
      %s250 = smul.addr %s246, 8
      %s251 = sadd.s32 %s249, %s250
      %s252 = smul.addr %s251, 8
      %s253 = scalar_lea.vmem %s4, %s252
      %v255 = vld [vmem:[%s240] sm:$0xf]
      %v256 = vld [vmem:[%s236] sm:$0xff]
      %v257 = vld [vmem:[%s236 + $0x8] sm:$0xff]
      %v258 = vld [vmem:[%s244] sm:$0xff]
      %260 = vset.pattern.permute.xlu0 0
      %261 = vperm.xlu0 %260, %v258
      %v262 = vpop.permute.xlu0 %261
      %v266 = vcombine.high %v256, %v256
      %v268 = vunpack.c.l.s4 1983009808
      %v269 = vunpack.c.0.s8 %v268
      %v270 = vlaneseq
      %v271 = vshrl.u32 %v270, 7
      %v272 = vsub.s32 %v269, %v271
      %v273 = vrot.slane %v256, %v272
      %v275 = vunpack.c.l.s4 1983009808
      %v276 = vunpack.c.0.s8 %v275
      %v277 = vlaneseq
      %v278 = vshrl.u32 %v277, 7
      %v279 = vsub.s32 %v276, %v278
      %v280 = vrot.slane %v266, %v279
      %v281 = vcombine.high %v273, %v273
      %v282 = vcombine.high %v280, %v280
      %v283 = vcombine.high %v257, %v257
      %v285 = vunpack.c.l.s4 1983009808
      %v286 = vunpack.c.0.s8 %v285
      %v287 = vlaneseq
      %v288 = vshrl.u32 %v287, 7
      %v289 = vsub.s32 %v286, %v288
      %v290 = vrot.slane %v257, %v289
      %v292 = vunpack.c.l.s4 1983009808
      %v293 = vunpack.c.0.s8 %v292
      %v294 = vlaneseq
      %v295 = vshrl.u32 %v294, 7
      %v296 = vsub.s32 %v293, %v295
      %v297 = vrot.slane %v283, %v296
      %v298 = vcombine.high %v290, %v290
      %v299 = vcombine.high %v297, %v297
      %vm300 = vcmask 31744
      %v302 = vsel %vm300, %v255, 0
      %vm304 = vcmask 1041408
      %v306 = vsel %vm304, %v273, 0
      %v309 = vsel %vm304, %v281, 0
      %v312 = vsel %vm304, %v280, 0
      %v315 = vsel %vm304, %v282, 0
      %v318 = vsel %vm304, %v290, 0
      %v321 = vsel %vm304, %v298, 0
      %v324 = vsel %vm304, %v297, 0
      %v327 = vsel %vm304, %v299, 0
      %329 = vmatprep.subr.bf16.mxu0 0
      %330 = vmatpush1.bf16.msra.mxu0 0
      %331 = vmatprep.subr.bf16.mxu0 0
      %332 = vmatpush1.bf16.msra.mxu0 0
      %333 = vmatprep.subr.bf16.mxu0 0
      %334 = vmatpush1.bf16.msra.mxu0 0
      %335 = vmatprep.subr.bf16.mxu0 0
      %336 = vmatpush1.bf16.msra.mxu0 0
      %337 = vmatprep.subr.bf16.mxu0 0
      %338 = vmatpush1.bf16.msra.mxu0 0
      %339 = vmatprep.subr.bf16.mxu0 0
      %340 = vmatpush1.bf16.msra.mxu0 0
      %341 = vmatprep.subr.bf16.mxu0 0
      %342 = vmatpush1.bf16.msra.mxu0 0
      %343 = vmatprep.subr.bf16.mxu0 %v309
      %344 = vmatpush1.bf16.msra.mxu0 %v306
      %345 = vmatprep.subr.bf16.mxu0 0
      %346 = vmatpush2.bf16.msra.mxu0 0
      %347 = vmatprep.subr.bf16.mxu0 0
      %348 = vmatpush2.bf16.msra.mxu0 0
      %349 = vmatprep.subr.bf16.mxu0 0
      %350 = vmatpush2.bf16.msra.mxu0 0
      %351 = vmatprep.subr.bf16.mxu0 0
      %352 = vmatpush2.bf16.msra.mxu0 0
      %353 = vmatprep.subr.bf16.mxu0 0
      %354 = vmatpush2.bf16.msra.mxu0 0
      %355 = vmatprep.subr.bf16.mxu0 0
      %356 = vmatpush2.bf16.msra.mxu0 0
      %357 = vmatprep.subr.bf16.mxu0 0
      %358 = vmatpush2.bf16.msra.mxu0 0
      %359 = vmatprep.subr.bf16.mxu0 0
      %360 = vmatpush2.bf16.msra.mxu0 0
      %361 = vmatprep.mubr.bf16.mxu0 0
      %362 = vmatmul.mubr.bf16.gmra.mxu0 %v302
      %v363 = vpop.f32.mrf.mxu0
      %v364 = vadd.f32 %v262, %v363
      %v365 = vpop.f32.mrf.mxu0
      %v366 = vadd.f32 %v262, %v365
      %v367 = vpop.f32.mrf.mxu0
      %v368 = vpop.f32.mrf.mxu0
      %369 = vdwg.mxu0
      %370 = vmatprep.subr.bf16.mxu0 0
      %371 = vmatpush1.bf16.msra.mxu0 0
      %372 = vmatprep.subr.bf16.mxu0 0
      %373 = vmatpush1.bf16.msra.mxu0 0
      %374 = vmatprep.subr.bf16.mxu0 0
      %375 = vmatpush1.bf16.msra.mxu0 0
      %376 = vmatprep.subr.bf16.mxu0 0
      %377 = vmatpush1.bf16.msra.mxu0 0
      %378 = vmatprep.subr.bf16.mxu0 0
      %379 = vmatpush1.bf16.msra.mxu0 0
      %380 = vmatprep.subr.bf16.mxu0 0
      %381 = vmatpush1.bf16.msra.mxu0 0
      %382 = vmatprep.subr.bf16.mxu0 0
      %383 = vmatpush1.bf16.msra.mxu0 0
      %384 = vmatprep.subr.bf16.mxu0 %v315
      %385 = vmatpush1.bf16.msra.mxu0 %v312
      %386 = vmatprep.subr.bf16.mxu0 0
      %387 = vmatpush2.bf16.msra.mxu0 0
      %388 = vmatprep.subr.bf16.mxu0 0
      %389 = vmatpush2.bf16.msra.mxu0 0
      %390 = vmatprep.subr.bf16.mxu0 0
      %391 = vmatpush2.bf16.msra.mxu0 0
      %392 = vmatprep.subr.bf16.mxu0 0
      %393 = vmatpush2.bf16.msra.mxu0 0
      %394 = vmatprep.subr.bf16.mxu0 0
      %395 = vmatpush2.bf16.msra.mxu0 0
      %396 = vmatprep.subr.bf16.mxu0 0
      %397 = vmatpush2.bf16.msra.mxu0 0
      %398 = vmatprep.subr.bf16.mxu0 0
      %399 = vmatpush2.bf16.msra.mxu0 0
      %400 = vmatprep.subr.bf16.mxu0 0
      %401 = vmatpush2.bf16.msra.mxu0 0
      %402 = vmatprep.mubr.bf16.mxu0 0
      %403 = vmatmul.mubr.bf16.gmra.mxu0 %v302
      %v404 = vpop.f32.mrf.mxu0
      %v405 = vadd.f32 %v262, %v404
      %v406 = vpop.f32.mrf.mxu0
      %v407 = vadd.f32 %v262, %v406
      %v408 = vpop.f32.mrf.mxu0
      %v409 = vpop.f32.mrf.mxu0
      %410 = vdwg.mxu0
      %411 = vmatprep.subr.bf16.mxu0 0
      %412 = vmatpush1.bf16.msra.mxu0 0
      %413 = vmatprep.subr.bf16.mxu0 0
      %414 = vmatpush1.bf16.msra.mxu0 0
      %415 = vmatprep.subr.bf16.mxu0 0
      %416 = vmatpush1.bf16.msra.mxu0 0
      %417 = vmatprep.subr.bf16.mxu0 0
      %418 = vmatpush1.bf16.msra.mxu0 0
      %419 = vmatprep.subr.bf16.mxu0 0
      %420 = vmatpush1.bf16.msra.mxu0 0
      %421 = vmatprep.subr.bf16.mxu0 0
      %422 = vmatpush1.bf16.msra.mxu0 0
      %423 = vmatprep.subr.bf16.mxu0 0
      %424 = vmatpush1.bf16.msra.mxu0 0
      %425 = vmatprep.subr.bf16.mxu0 %v321
      %426 = vmatpush1.bf16.msra.mxu0 %v318
      %427 = vmatprep.subr.bf16.mxu0 0
      %428 = vmatpush2.bf16.msra.mxu0 0
      %429 = vmatprep.subr.bf16.mxu0 0
      %430 = vmatpush2.bf16.msra.mxu0 0
      %431 = vmatprep.subr.bf16.mxu0 0
      %432 = vmatpush2.bf16.msra.mxu0 0
      %433 = vmatprep.subr.bf16.mxu0 0
      %434 = vmatpush2.bf16.msra.mxu0 0
      %435 = vmatprep.subr.bf16.mxu0 0
      %436 = vmatpush2.bf16.msra.mxu0 0
      %437 = vmatprep.subr.bf16.mxu0 0
      %438 = vmatpush2.bf16.msra.mxu0 0
      %439 = vmatprep.subr.bf16.mxu0 0
      %440 = vmatpush2.bf16.msra.mxu0 0
      %441 = vmatprep.subr.bf16.mxu0 0
      %442 = vmatpush2.bf16.msra.mxu0 0
      %443 = vmatprep.mubr.bf16.mxu0 0
      %444 = vmatmul.mubr.bf16.gmra.mxu0 %v302
      %v445 = vpop.f32.mrf.mxu0
      %v446 = vadd.f32 %v262, %v445
      %v447 = vpop.f32.mrf.mxu0
      %v448 = vadd.f32 %v262, %v447
      %v449 = vpop.f32.mrf.mxu0
      %v450 = vpop.f32.mrf.mxu0
      %451 = vdwg.mxu0
      %452 = vmatprep.subr.bf16.mxu0 0
      %453 = vmatpush1.bf16.msra.mxu0 0
      %454 = vmatprep.subr.bf16.mxu0 0
      %455 = vmatpush1.bf16.msra.mxu0 0
      %456 = vmatprep.subr.bf16.mxu0 0
      %457 = vmatpush1.bf16.msra.mxu0 0
      %458 = vmatprep.subr.bf16.mxu0 0
      %459 = vmatpush1.bf16.msra.mxu0 0
      %460 = vmatprep.subr.bf16.mxu0 0
      %461 = vmatpush1.bf16.msra.mxu0 0
      %462 = vmatprep.subr.bf16.mxu0 0
      %463 = vmatpush1.bf16.msra.mxu0 0
      %464 = vmatprep.subr.bf16.mxu0 0
      %465 = vmatpush1.bf16.msra.mxu0 0
      %466 = vmatprep.subr.bf16.mxu0 %v327
      %467 = vmatpush1.bf16.msra.mxu0 %v324
      %468 = vmatprep.subr.bf16.mxu0 0
      %469 = vmatpush2.bf16.msra.mxu0 0
      %470 = vmatprep.subr.bf16.mxu0 0
      %471 = vmatpush2.bf16.msra.mxu0 0
      %472 = vmatprep.subr.bf16.mxu0 0
      %473 = vmatpush2.bf16.msra.mxu0 0
      %474 = vmatprep.subr.bf16.mxu0 0
      %475 = vmatpush2.bf16.msra.mxu0 0
      %476 = vmatprep.subr.bf16.mxu0 0
      %477 = vmatpush2.bf16.msra.mxu0 0
      %478 = vmatprep.subr.bf16.mxu0 0
      %479 = vmatpush2.bf16.msra.mxu0 0
      %480 = vmatprep.subr.bf16.mxu0 0
      %481 = vmatpush2.bf16.msra.mxu0 0
      %482 = vmatprep.subr.bf16.mxu0 0
      %483 = vmatpush2.bf16.msra.mxu0 0
      %484 = vmatprep.mubr.bf16.mxu0 0
      %485 = vmatmul.mubr.bf16.gmra.mxu0 %v302
      %v486 = vpop.f32.mrf.mxu0
      %v487 = vadd.f32 %v262, %v486
      %v488 = vpop.f32.mrf.mxu0
      %v489 = vadd.f32 %v262, %v488
      %v490 = vpop.f32.mrf.mxu0
      %v491 = vpop.f32.mrf.mxu0
      %492 = vdwg.mxu0
      %vm493 = vcmp.ge.f32.partialorder %v364, 0.0
      %vm494 = vcmp.ge.f32.partialorder %v366, 0.0
      %vm495 = vcmp.ge.f32.partialorder %v405, 0.0
      %vm496 = vcmp.ge.f32.partialorder %v407, 0.0
      %vm497 = vcmp.ge.f32.partialorder %v446, 0.0
      %vm498 = vcmp.ge.f32.partialorder %v448, 0.0
      %vm499 = vcmp.ge.f32.partialorder %v487, 0.0
      %vm500 = vcmp.ge.f32.partialorder %v489, 0.0
      %v501 = vmul.f32 %v364, 0.1
      %v502 = vmul.f32 %v366, 0.1
      %v503 = vmul.f32 %v405, 0.1
      %v504 = vmul.f32 %v407, 0.1
      %v505 = vmul.f32 %v446, 0.1
      %v506 = vmul.f32 %v448, 0.1
      %v507 = vmul.f32 %v487, 0.1
      %v508 = vmul.f32 %v489, 0.1
      %v509 = vsel %vm493, %v364, %v501
      %v510 = vsel %vm494, %v366, %v502
      %v511 = vsel %vm495, %v405, %v503
      %v512 = vsel %vm496, %v407, %v504
      %v513 = vsel %vm497, %v446, %v505
      %v514 = vsel %vm498, %v448, %v506
      %v515 = vsel %vm499, %v487, %v507
      %v516 = vsel %vm500, %v489, %v508
      %v517 = vld [vmem:[%s3] sm:$0x3f]
      %v518 = vld [vmem:[%s3 + $0x8] sm:$0x3f]
      %v519 = vld [vmem:[%s3 + $0x10] sm:$0x3f]
      %v520 = vld [vmem:[%s3 + $0x18] sm:$0x3f]
      %v521 = vld [vmem:[%s3 + $0x20] sm:$0x3f]
      %v522 = vld [vmem:[%s3 + $0x28] sm:$0x3f]
      %v523 = vld [vmem:[%s3 + $0x30] sm:$0x3f]
      %v524 = vld [vmem:[%s3 + $0x38] sm:$0x3f]
      %525 = vrot.lane.b32.xlu0 %v509, 64
      %v526 = vpop.permute.xlu0 %525
      %527 = vrot.lane.b32.xlu0 %v510, 64
      %v528 = vpop.permute.xlu0 %527
      %529 = vrot.lane.b32.xlu0 %v511, 64
      %v530 = vpop.permute.xlu0 %529
      %531 = vrot.lane.b32.xlu0 %v512, 64
      %v532 = vpop.permute.xlu0 %531
      %533 = vrot.lane.b32.xlu0 %v513, 64
      %v534 = vpop.permute.xlu0 %533
      %535 = vrot.lane.b32.xlu0 %v514, 64
      %v536 = vpop.permute.xlu0 %535
      %537 = vrot.lane.b32.xlu0 %v515, 64
      %v538 = vpop.permute.xlu0 %537
      %539 = vrot.lane.b32.xlu0 %v516, 64
      %v540 = vpop.permute.xlu0 %539
      %v541 = vlaneseq
      %v542 = vand.u32 %v541, 127
      %vm543 = vcmp.lt.s32.totalorder %v542, 64
      %v544 = vsel %vm543, %v538, %v540
      %v545 = vsel %vm543, %v536, %v538
      %v546 = vsel %vm543, %v534, %v536
      %v547 = vsel %vm543, %v532, %v534
      %v548 = vsel %vm543, %v530, %v532
      %v549 = vsel %vm543, %v528, %v530
      %v550 = vsel %vm543, %v526, %v528
      %v551 = vsel %vm543, %v540, %v526
      %v552 = vlaneseq
      %v553 = vshrl.u32 %v552, 7
      %v554 = vsub.s32 0, %v553
      %v555 = vrot.slane %v517, %v554
      %v556 = vlaneseq
      %v557 = vshrl.u32 %v556, 7
      %v558 = vsub.s32 0, %v557
      %v559 = vrot.slane %v518, %v558
      %v560 = vlaneseq
      %v561 = vshrl.u32 %v560, 7
      %v562 = vsub.s32 0, %v561
      %v563 = vrot.slane %v519, %v562
      %v564 = vlaneseq
      %v565 = vshrl.u32 %v564, 7
      %v566 = vsub.s32 0, %v565
      %v567 = vrot.slane %v520, %v566
      %v568 = vlaneseq
      %v569 = vshrl.u32 %v568, 7
      %v570 = vsub.s32 0, %v569
      %v571 = vrot.slane %v521, %v570
      %v572 = vlaneseq
      %v573 = vshrl.u32 %v572, 7
      %v574 = vsub.s32 0, %v573
      %v575 = vrot.slane %v522, %v574
      %v576 = vlaneseq
      %v577 = vshrl.u32 %v576, 7
      %v578 = vsub.s32 0, %v577
      %v579 = vrot.slane %v523, %v578
      %v580 = vlaneseq
      %v581 = vshrl.u32 %v580, 7
      %v582 = vsub.s32 0, %v581
      %v583 = vrot.slane %v524, %v582
      %v584 = vmul.f32 %v555, %v509
      %v585 = vmul.f32 %v559, %v510
      %v586 = vmul.f32 %v563, %v511
      %v587 = vmul.f32 %v567, %v512
      %v588 = vmul.f32 %v571, %v513
      %v589 = vmul.f32 %v575, %v514
      %v590 = vmul.f32 %v579, %v515
      %v591 = vmul.f32 %v583, %v516
      %v592 = vlaneseq
      %v593 = vshrl.u32 %v592, 7
      %v594 = vsub.s32 1, %v593
      %v595 = vrot.slane %v517, %v594
      %v596 = vlaneseq
      %v597 = vshrl.u32 %v596, 7
      %v598 = vsub.s32 1, %v597
      %v599 = vrot.slane %v518, %v598
      %v600 = vlaneseq
      %v601 = vshrl.u32 %v600, 7
      %v602 = vsub.s32 1, %v601
      %v603 = vrot.slane %v519, %v602
      %v604 = vlaneseq
      %v605 = vshrl.u32 %v604, 7
      %v606 = vsub.s32 1, %v605
      %v607 = vrot.slane %v520, %v606
      %v608 = vlaneseq
      %v609 = vshrl.u32 %v608, 7
      %v610 = vsub.s32 1, %v609
      %v611 = vrot.slane %v521, %v610
      %v612 = vlaneseq
      %v613 = vshrl.u32 %v612, 7
      %v614 = vsub.s32 1, %v613
      %v615 = vrot.slane %v522, %v614
      %v616 = vlaneseq
      %v617 = vshrl.u32 %v616, 7
      %v618 = vsub.s32 1, %v617
      %v619 = vrot.slane %v523, %v618
      %v620 = vlaneseq
      %v621 = vshrl.u32 %v620, 7
      %v622 = vsub.s32 1, %v621
      %v623 = vrot.slane %v524, %v622
      %v624 = vmul.f32 %v595, %v551
      %v625 = vmul.f32 %v599, %v550
      %v626 = vmul.f32 %v603, %v549
      %v627 = vmul.f32 %v607, %v548
      %v628 = vmul.f32 %v611, %v547
      %v629 = vmul.f32 %v615, %v546
      %v630 = vmul.f32 %v619, %v545
      %v631 = vmul.f32 %v623, %v544
      %v632 = vadd.f32 %v584, %v624
      %v633 = vadd.f32 %v585, %v625
      %v634 = vadd.f32 %v586, %v626
      %v635 = vadd.f32 %v587, %v627
      %v636 = vadd.f32 %v588, %v628
      %v637 = vadd.f32 %v589, %v629
      %v638 = vadd.f32 %v590, %v630
      %v639 = vadd.f32 %v591, %v631
      %v640 = vlaneseq
      %v641 = vshrl.u32 %v640, 7
      %v642 = vsub.s32 2, %v641
      %v643 = vrot.slane %v517, %v642
      %v644 = vlaneseq
      %v645 = vshrl.u32 %v644, 7
      %v646 = vsub.s32 2, %v645
      %v647 = vrot.slane %v518, %v646
      %v648 = vlaneseq
      %v649 = vshrl.u32 %v648, 7
      %v650 = vsub.s32 2, %v649
      %v651 = vrot.slane %v519, %v650
      %v652 = vlaneseq
      %v653 = vshrl.u32 %v652, 7
      %v654 = vsub.s32 2, %v653
      %v655 = vrot.slane %v520, %v654
      %v656 = vlaneseq
      %v657 = vshrl.u32 %v656, 7
      %v658 = vsub.s32 2, %v657
      %v659 = vrot.slane %v521, %v658
      %v660 = vlaneseq
      %v661 = vshrl.u32 %v660, 7
      %v662 = vsub.s32 2, %v661
      %v663 = vrot.slane %v522, %v662
      %v664 = vlaneseq
      %v665 = vshrl.u32 %v664, 7
      %v666 = vsub.s32 2, %v665
      %v667 = vrot.slane %v523, %v666
      %v668 = vlaneseq
      %v669 = vshrl.u32 %v668, 7
      %v670 = vsub.s32 2, %v669
      %v671 = vrot.slane %v524, %v670
      %v672 = vmul.f32 %v643, %v550
      %v673 = vmul.f32 %v647, %v549
      %v674 = vmul.f32 %v651, %v548
      %v675 = vmul.f32 %v655, %v547
      %v676 = vmul.f32 %v659, %v546
      %v677 = vmul.f32 %v663, %v545
      %v678 = vmul.f32 %v667, %v544
      %v679 = vmul.f32 %v671, %v551
      %v680 = vadd.f32 %v632, %v672
      %v681 = vadd.f32 %v633, %v673
      %v682 = vadd.f32 %v634, %v674
      %v683 = vadd.f32 %v635, %v675
      %v684 = vadd.f32 %v636, %v676
      %v685 = vadd.f32 %v637, %v677
      %v686 = vadd.f32 %v638, %v678
      %v687 = vadd.f32 %v639, %v679
      %688 = vrot.lane.b32.xlu0 %v680, 2
      %v689 = vpop.permute.xlu0 %688
      %690 = vrot.lane.b32.xlu0 %v681, 2
      %v691 = vpop.permute.xlu0 %690
      %692 = vrot.lane.b32.xlu0 %v682, 2
      %v693 = vpop.permute.xlu0 %692
      %694 = vrot.lane.b32.xlu0 %v683, 2
      %v695 = vpop.permute.xlu0 %694
      %696 = vrot.lane.b32.xlu0 %v684, 2
      %v697 = vpop.permute.xlu0 %696
      %698 = vrot.lane.b32.xlu0 %v685, 2
      %v699 = vpop.permute.xlu0 %698
      %700 = vrot.lane.b32.xlu0 %v686, 2
      %v701 = vpop.permute.xlu0 %700
      %702 = vrot.lane.b32.xlu0 %v687, 2
      %v703 = vpop.permute.xlu0 %702
      %vm704 = vcmp.lt.s32.totalorder %v542, 2
      %v705 = vsel %vm704, %v701, %v703
      %v706 = vsel %vm704, %v699, %v701
      %v707 = vsel %vm704, %v697, %v699
      %v708 = vsel %vm704, %v695, %v697
      %v709 = vsel %vm704, %v693, %v695
      %v710 = vsel %vm704, %v691, %v693
      %v711 = vsel %vm704, %v689, %v691
      %v712 = vsel %vm704, %v703, %v689
      %713 = vrot.lane.b32.xlu0 %v680, 126
      %v714 = vpop.permute.xlu0 %713
      %715 = vrot.lane.b32.xlu0 %v681, 126
      %v716 = vpop.permute.xlu0 %715
      %717 = vrot.lane.b32.xlu0 %v682, 126
      %v718 = vpop.permute.xlu0 %717
      %719 = vrot.lane.b32.xlu0 %v683, 126
      %v720 = vpop.permute.xlu0 %719
      %721 = vrot.lane.b32.xlu0 %v684, 126
      %v722 = vpop.permute.xlu0 %721
      %723 = vrot.lane.b32.xlu0 %v685, 126
      %v724 = vpop.permute.xlu0 %723
      %725 = vrot.lane.b32.xlu0 %v686, 126
      %v726 = vpop.permute.xlu0 %725
      %727 = vrot.lane.b32.xlu0 %v687, 126
      %v728 = vpop.permute.xlu0 %727
      %vm729 = vcmp.lt.s32.totalorder %v542, 126
      %v730 = vsel %vm729, %v726, %v728
      %v731 = vsel %vm729, %v724, %v726
      %v732 = vsel %vm729, %v722, %v724
      %v733 = vsel %vm729, %v720, %v722
      %v734 = vsel %vm729, %v718, %v720
      %v735 = vsel %vm729, %v716, %v718
      %v736 = vsel %vm729, %v714, %v716
      %v737 = vsel %vm729, %v728, %v714
      %v738 = vlaneseq
      %v739 = vshrl.u32 %v738, 7
      %v740 = vsub.s32 3, %v739
      %v741 = vrot.slane %v517, %v740
      %v742 = vlaneseq
      %v743 = vshrl.u32 %v742, 7
      %v744 = vsub.s32 3, %v743
      %v745 = vrot.slane %v518, %v744
      %v746 = vlaneseq
      %v747 = vshrl.u32 %v746, 7
      %v748 = vsub.s32 3, %v747
      %v749 = vrot.slane %v519, %v748
      %v750 = vlaneseq
      %v751 = vshrl.u32 %v750, 7
      %v752 = vsub.s32 3, %v751
      %v753 = vrot.slane %v520, %v752
      %v754 = vlaneseq
      %v755 = vshrl.u32 %v754, 7
      %v756 = vsub.s32 3, %v755
      %v757 = vrot.slane %v521, %v756
      %v758 = vlaneseq
      %v759 = vshrl.u32 %v758, 7
      %v760 = vsub.s32 3, %v759
      %v761 = vrot.slane %v522, %v760
      %v762 = vlaneseq
      %v763 = vshrl.u32 %v762, 7
      %v764 = vsub.s32 3, %v763
      %v765 = vrot.slane %v523, %v764
      %v766 = vlaneseq
      %v767 = vshrl.u32 %v766, 7
      %v768 = vsub.s32 3, %v767
      %v769 = vrot.slane %v524, %v768
      %v770 = vmul.f32 %v741, %v680
      %v771 = vmul.f32 %v745, %v681
      %v772 = vmul.f32 %v749, %v682
      %v773 = vmul.f32 %v753, %v683
      %v774 = vmul.f32 %v757, %v684
      %v775 = vmul.f32 %v761, %v685
      %v776 = vmul.f32 %v765, %v686
      %v777 = vmul.f32 %v769, %v687
      %v778 = vlaneseq
      %v779 = vshrl.u32 %v778, 7
      %v780 = vsub.s32 4, %v779
      %v781 = vrot.slane %v517, %v780
      %v782 = vlaneseq
      %v783 = vshrl.u32 %v782, 7
      %v784 = vsub.s32 4, %v783
      %v785 = vrot.slane %v518, %v784
      %v786 = vlaneseq
      %v787 = vshrl.u32 %v786, 7
      %v788 = vsub.s32 4, %v787
      %v789 = vrot.slane %v519, %v788
      %v790 = vlaneseq
      %v791 = vshrl.u32 %v790, 7
      %v792 = vsub.s32 4, %v791
      %v793 = vrot.slane %v520, %v792
      %v794 = vlaneseq
      %v795 = vshrl.u32 %v794, 7
      %v796 = vsub.s32 4, %v795
      %v797 = vrot.slane %v521, %v796
      %v798 = vlaneseq
      %v799 = vshrl.u32 %v798, 7
      %v800 = vsub.s32 4, %v799
      %v801 = vrot.slane %v522, %v800
      %v802 = vlaneseq
      %v803 = vshrl.u32 %v802, 7
      %v804 = vsub.s32 4, %v803
      %v805 = vrot.slane %v523, %v804
      %v806 = vlaneseq
      %v807 = vshrl.u32 %v806, 7
      %v808 = vsub.s32 4, %v807
      %v809 = vrot.slane %v524, %v808
      %v810 = vmul.f32 %v781, %v712
      %v811 = vmul.f32 %v785, %v711
      %v812 = vmul.f32 %v789, %v710
      %v813 = vmul.f32 %v793, %v709
      %v814 = vmul.f32 %v797, %v708
      %v815 = vmul.f32 %v801, %v707
      %v816 = vmul.f32 %v805, %v706
      %v817 = vmul.f32 %v809, %v705
      %v818 = vadd.f32 %v770, %v810
      %v819 = vadd.f32 %v771, %v811
      %v820 = vadd.f32 %v772, %v812
      %v821 = vadd.f32 %v773, %v813
      %v822 = vadd.f32 %v774, %v814
      %v823 = vadd.f32 %v775, %v815
      %v824 = vadd.f32 %v776, %v816
      %v825 = vadd.f32 %v777, %v817
      %v826 = vlaneseq
      %v827 = vshrl.u32 %v826, 7
      %v828 = vsub.s32 5, %v827
      %v829 = vrot.slane %v517, %v828
      %v830 = vlaneseq
      %v831 = vshrl.u32 %v830, 7
      %v832 = vsub.s32 5, %v831
      %v833 = vrot.slane %v518, %v832
      %v834 = vlaneseq
      %v835 = vshrl.u32 %v834, 7
      %v836 = vsub.s32 5, %v835
      %v837 = vrot.slane %v519, %v836
      %v838 = vlaneseq
      %v839 = vshrl.u32 %v838, 7
      %v840 = vsub.s32 5, %v839
      %v841 = vrot.slane %v520, %v840
      %v842 = vlaneseq
      %v843 = vshrl.u32 %v842, 7
      %v844 = vsub.s32 5, %v843
      %v845 = vrot.slane %v521, %v844
      %v846 = vlaneseq
      %v847 = vshrl.u32 %v846, 7
      %v848 = vsub.s32 5, %v847
      %v849 = vrot.slane %v522, %v848
      %v850 = vlaneseq
      %v851 = vshrl.u32 %v850, 7
      %v852 = vsub.s32 5, %v851
      %v853 = vrot.slane %v523, %v852
      %v854 = vlaneseq
      %v855 = vshrl.u32 %v854, 7
      %v856 = vsub.s32 5, %v855
      %v857 = vrot.slane %v524, %v856
      %v858 = vmul.f32 %v829, %v736
      %v859 = vmul.f32 %v833, %v735
      %v860 = vmul.f32 %v837, %v734
      %v861 = vmul.f32 %v841, %v733
      %v862 = vmul.f32 %v845, %v732
      %v863 = vmul.f32 %v849, %v731
      %v864 = vmul.f32 %v853, %v730
      %v865 = vmul.f32 %v857, %v737
      %v866 = vadd.f32 %v818, %v858
      %v867 = vadd.f32 %v819, %v859
      %v868 = vadd.f32 %v820, %v860
      %v869 = vadd.f32 %v821, %v861
      %v870 = vadd.f32 %v822, %v862
      %v871 = vadd.f32 %v823, %v863
      %v872 = vadd.f32 %v824, %v864
      %v873 = vadd.f32 %v825, %v865
      %874 = vst [vmem:[%s253] sm:$0xff] %v866
      %875 = vst [vmem:[%s253 + $0x8] sm:$0xff] %v867
      %876 = vst [vmem:[%s253 + $0x10] sm:$0xff] %v868
      %877 = vst [vmem:[%s253 + $0x18] sm:$0xff] %v869
      %878 = vst [vmem:[%s253 + $0x20] sm:$0xff] %v870
      %879 = vst [vmem:[%s253 + $0x28] sm:$0xff] %v871
      %880 = vst [vmem:[%s253 + $0x30] sm:$0xff] %v872
      %881 = vst [vmem:[%s253 + $0x38] sm:$0xff] %v873
      %p882 = scmp.lt.s32.totalorder %s19, 1
      %s883 = scalar_select %p882, %s19, 1
      %p884 = scmp.lt.s32.totalorder %s20, 0
      %s885 = scalar_select %p884, %s20, 0
      %s886 = smul.addr %s885, 8
      %s887 = smul.addr %s883, 8
      %s888 = sadd.s32 %s886, %s887
      %s889 = smul.addr %s888, 8
      %s890 = scalar_lea.vmem %s4, %s889
      // Predicated region
      $region37: #{router_v3_forward.1} parent=35 // pred_check
        %p891 = pneg %p146
      $region38: #{router_v3_forward.1} parent=35 // pred_check_branch
        %893 = sbr.rel (%p891) target = $region40
      $region39: #{router_v3_forward.1} parent=35 // pred_region
        _
      $region40: #{router_v3_forward.1} parent=35 // pred_fallthru
        _
    $region36: #{router_v3_forward.1} parent=5 // pred_fallthru
      _
    %p894 = scmp.le.s32.totalorder 2, %s10
    // Predicated region
    $region41: #{router_v3_forward.1} parent=5 // pred_check
      %p895 = pneg %p894
    $region42: #{router_v3_forward.1} parent=5 // pred_check_branch
      %897 = sbr.rel (%p895) target = $region44
    $region43: #{router_v3_forward.1} parent=5 // pred_region
      %s898 = ssub.s32 %s10, 2
      // Predicated region
      $region45: #{router_v3_forward.1} parent=43 // pred_check
        %p899 = pneg %p152
      $region46: #{router_v3_forward.1} parent=43 // pred_check_branch
        %901 = sbr.rel (%p899) target = $region48
      $region47: #{router_v3_forward.1} parent=43 // pred_region
        %p902 = scmp.lt.s32.totalorder %s21, 1
        %s903 = scalar_select %p902, %s21, 1
        %p904 = scmp.lt.s32.totalorder %s22, 0
        %s905 = scalar_select %p904, %s22, 0
        %s906 = smul.addr %s905, 8
        %s907 = smul.addr %s903, 8
        %s908 = sadd.s32 %s906, %s907
        %s909 = smul.addr %s908, 8
        %s910 = scalar_lea.vmem %s4, %s909
      $region48: #{router_v3_forward.1} parent=43 // pred_fallthru
        _
    $region44: #{router_v3_forward.1} parent=5 // pred_fallthru
      _
  $region6: #{router_v3_forward.1} parent=0 // loop_footer
    %s14 = sadd.s32 1, %s10
  $region7: #{router_v3_forward.1} parent=0 // loop_footer_branch
    %9 = sbr.rel target = $region3
  $region8: #{router_v3_forward.1} parent=0 // loop_exit
    _

</llo_original>
